<compile_context>
chip_gen: v5e
topology: v5e:2x2
jax: 0.10.0
libtpu: 0.0.40
codegen_flags: <defaults>
</compile_context>

<pallas_src>
import math
from typing import List, Optional

import jax
import jax.numpy as jnp
from jax import lax
from jax.experimental import pallas as pl
from jax.experimental.pallas import tpu as pltpu


def _get_slopes(n: int) -> List[float]:
    """Same slope schedule as the PyTorch ALiBi module."""

    def get_slopes_power_of_2(n):
        start = 2 ** (-2 ** (-(math.log2(n) - 3)))
        ratio = start
        return [start * ratio**i for i in range(n)]

    if math.log2(n).is_integer():
        return get_slopes_power_of_2(n)
    closest_power_of_2 = 2 ** math.floor(math.log2(n))
    return (
        get_slopes_power_of_2(closest_power_of_2)
        + _get_slopes(2 * closest_power_of_2)[0::2][: n - closest_power_of_2]
    )


def _alibi_kernel(slopes_ref, out_ref):
    # slopes_ref: SMEM scalar-prefetch ref, shape (n_heads,), float32.
    # out_ref:    VMEM tile, shape (1, HB, TQ, TK).
    _, hb, tq, tk = out_ref.shape
    h0 = pl.program_id(0) * hb
    q0 = pl.program_id(1) * tq
    k0 = pl.program_id(2) * tk

    # Narrow int32 iotas + broadcast subtract: exact positions for any context
    # length (no f32 2^24 limit); grid offsets keep absolute positions correct.
    q_pos = lax.broadcasted_iota(jnp.int32, (tq, 1), 0) + q0
    k_pos = lax.broadcasted_iota(jnp.int32, (1, tk), 1) + k0
    dist = jnp.abs(q_pos - k_pos)  # (TQ, TK) int32, shared across the hb heads.

    # Scale by each head's slope; hb is small, so a static unroll is fine.
    # Convert to f32 only at the multiply (matches the f32 PyTorch reference).
    for h in range(hb):
        neg_slope = -slopes_ref[h0 + h]  # scalar SMEM read, dynamic head index
        out_ref[0, h, :, :] = (dist.astype(jnp.float32) * neg_slope).astype(
            out_ref.dtype
        )


def _cdiv(a: int, b: int) -> int:
    return -(-a // b)


def _pick_tile(dim: int, cap: int, align: int) -> int:
    """Largest tile <= cap that is a multiple of `align`, or the full dim."""
    if dim <= cap:
        return dim  # full extent is always a legal block shape
    t = max(align, (cap // align) * align)
    for cand in range(t, align - 1, -align):
        if dim % cand == 0:
            return cand  # prefer an even divisor (no padded edge blocks)
    return t  # fall back: cdiv grid with a Pallas-cropped padded edge block


def _largest_divisor_at_most(n: int, cap: int) -> int:
    cap = max(1, min(n, cap))
    for d in range(cap, 0, -1):
        if n % d == 0:
            return d
    return 1


def _vmem_capacity_bytes() -> int:
    """Physical VMEM per core; conservative (v7x-sized) fallback."""
    try:
        cap = getattr(pltpu.get_tpu_info(), "vmem_capacity_bytes", None)
        if cap:
            return int(cap)
    except Exception:
        pass
    return 64 * 1024 * 1024


def _tile_budget_bytes(vmem_cap: int) -> int:
    # 128 MiB-VMEM parts (v5e/v6e): bigger output tiles amortize the ~0.35 us
    # per-step pipeline overhead.  64 MiB v7x: stay at 8 MiB so that 2x tile +
    # the int32 distance temp fits comfortably.
    if vmem_cap >= 96 * 1024 * 1024:
        return 16 * 1024 * 1024
    return 8 * 1024 * 1024


def alibi_bias(
    slopes: jax.Array,
    query_len: int,
    key_len: Optional[int] = None,
    *,
    out_dtype=jnp.float32,  # bf16 halves HBM writeback (opt-in numerical deviation)
    max_tq: Optional[int] = None,   # override caps (mainly for tests)
    max_tk: Optional[int] = None,
    max_hb: int = 8,
) -> jax.Array:
    """Returns the ALiBi bias tensor of shape (1, n_heads, query_len, key_len)."""
    if key_len is None:
        key_len = query_len
    n_heads = int(slopes.shape[0])

    elem = jnp.dtype(out_dtype).itemsize
    vmem_cap = _vmem_capacity_bytes()
    budget_bytes = _tile_budget_bytes(vmem_cap)
    budget_elems = max(8 * 128, budget_bytes // elem)

    # Prefer a full-key_len K slab (largest contiguous writeback bursts); only
    # tile K (multiples of 128) when even 8 rows of full K exceed the budget.
    tk_cap = max(128, budget_elems // 8)
    if max_tk is not None:
        tk_cap = min(tk_cap, max_tk)
    tk = _pick_tile(key_len, tk_cap, 128)

    tq_cap = max(8, budget_elems // tk)
    if max_tq is not None:
        tq_cap = min(tq_cap, max_tq)
    tq = _pick_tile(query_len, tq_cap, 8)

    per_head_bytes = tq * tk * elem
    hb_cap = max(1, min(max_hb, budget_bytes // max(per_head_bytes, 1)))
    hb = _largest_divisor_at_most(n_heads, hb_cap)

    q_tiles = _cdiv(query_len, tq)
    k_tiles = _cdiv(key_len, tk)
    # v7x megacore: keep at least one parallel grid axis with extent >= 2 so both
    # TensorCores issue writeback DMAs (don't collapse the head axis to 1 when
    # the Q/K axes are already single-tile).
    if q_tiles * k_tiles == 1 and hb == n_heads and n_heads > 1:
        hb = _largest_divisor_at_most(n_heads, n_heads // 2)

    out_tile_bytes = hb * tq * tk * elem
    dist_bytes = tq * tk * 4  # int32 |q-k| intermediate, live across the hb loop
    # Real working set: double-buffered output tile + distance temp + Mosaic
    # internal scratch headroom.
    vmem_limit = 2 * out_tile_bytes + dist_bytes + 2 * 1024 * 1024
    vmem_limit = int(min(max(vmem_limit, 16 * 1024 * 1024), vmem_cap))

    grid = (n_heads // hb, q_tiles, k_tiles)

    return pl.pallas_call(
        _alibi_kernel,
        out_shape=jax.ShapeDtypeStruct((1, n_heads, query_len, key_len), out_dtype),
        grid_spec=pltpu.PrefetchScalarGridSpec(
            num_scalar_prefetch=1,  # slopes -> SMEM once, before the grid runs
            grid=grid,
            in_specs=[],
            out_specs=pl.BlockSpec(
                (1, hb, tq, tk),
                lambda h, qi, ki, slopes: (0, h, qi, ki),
            ),
        ),
        compiler_params=pltpu.CompilerParams(
            # No reduction anywhere: all axes parallel (lets v7x shard across TCs).
            dimension_semantics=("parallel", "parallel", "parallel"),
            vmem_limit_bytes=vmem_limit,
        ),
    )(slopes)


def _reference_alibi(slopes: jax.Array, query_len: int, key_len: int) -> jax.Array:
    q = jnp.arange(query_len, dtype=jnp.float32)
    k = jnp.arange(key_len, dtype=jnp.float32)
    bias = jnp.abs(q[:, None] - k[None, :])[None, None]
    return -bias * slopes.reshape(1, -1, 1, 1)


if __name__ == "__main__":
    n_heads = 8
    # ALiBi slopes are computed, not learned; the forward takes only lengths.
    slopes = jnp.asarray(_get_slopes(n_heads), dtype=jnp.float32)
    _ = jax.random.PRNGKey(0)  # deterministic-input convention; no tensor inputs

    # Case 1: module-default small shape (key_len defaults to query_len).
    q1 = 8
    out1 = jax.block_until_ready(alibi_bias(slopes, q1))
    ref1 = _reference_alibi(slopes, q1, q1)
    assert out1.shape == (1, n_heads, q1, q1), out1.shape
    assert out1.dtype == jnp.float32, out1.dtype
    assert jnp.allclose(out1, ref1, atol=1e-6), "mismatch vs reference (case 1)"

    # Case 2: force small tile caps to exercise the (head, Q, K) grid-tiling path
    # (offsets in the iotas, lane-dense 128-wide K tiles, multi-head blocks).
    q2, k2 = 128, 256
    out2 = jax.block_until_ready(
        alibi_bias(slopes, q2, k2, max_tq=64, max_tk=128, max_hb=2)
    )
    ref2 = _reference_alibi(slopes, q2, k2)
    assert out2.shape == (1, n_heads, q2, k2), out2.shape
    assert jnp.allclose(out2, ref2, atol=1e-6), "mismatch vs reference (case 2)"

    # Case 3: non-divisor Q tile -> padded edge block; verifies Pallas crops the
    # out-of-range rows (positions past query_len are computed but never stored).
    q3, k3 = 20, 384
    out3 = jax.block_until_ready(
        alibi_bias(slopes, q3, k3, max_tq=16, max_tk=128, max_hb=4)
    )
    ref3 = _reference_alibi(slopes, q3, k3)
    assert out3.shape == (1, n_heads, q3, k3), out3.shape
    assert jnp.allclose(out3, ref3, atol=1e-6), "mismatch vs reference (case 3)"

    print("KERNEL_OK")
</pallas_src>

<mosaic_0001>
module attributes {stable_mosaic.version = 11 : i64} {
  func.func @_alibi_kernel(%arg0: i32, %arg1: i32, %arg2: i32, %arg3: memref<8xf32, #tpu.memory_space<smem>>, %arg4: memref<1x4x8x8xf32, #tpu.memory_space<vmem>>) attributes {dimension_semantics = [#tpu.dimension_semantics<parallel>, #tpu.dimension_semantics<parallel>, #tpu.dimension_semantics<parallel>], iteration_bounds = array<i64: 2, 1, 1>, scalar_prefetch = 1 : i64, scratch_operands = 0 : i64, tpu.core_type = #tpu.core_type<tc>, window_params = [{transform_indices = @transform_0, window_bounds = array<i64: 1, 4, 8, 8>}]} {
    %c4_i32 = arith.constant 4 : i32
    %0 = arith.muli %arg0, %c4_i32 : i32
    %c8_i32 = arith.constant 8 : i32
    %1 = arith.muli %arg1, %c8_i32 : i32
    %c8_i32_0 = arith.constant 8 : i32
    %2 = arith.muli %arg2, %c8_i32_0 : i32
    %3 = tpu.iota {dimensions = array<i32: 0>} : vector<8x1xi32>
    %4 = vector.broadcast %1 : i32 to vector<8x1xi32>
    %5 = arith.addi %3, %4 : vector<8x1xi32>
    %6 = tpu.iota {dimensions = array<i32: 1>} : vector<1x8xi32>
    %7 = vector.broadcast %2 : i32 to vector<1x8xi32>
    %8 = arith.addi %6, %7 : vector<1x8xi32>
    %9 = vector.broadcast %5 : vector<8x1xi32> to vector<8x8xi32>
    %10 = vector.broadcast %8 : vector<1x8xi32> to vector<8x8xi32>
    %11 = arith.subi %9, %10 : vector<8x8xi32>
    %12 = math.absi %11 : vector<8x8xi32>
    %c0_i32 = arith.constant 0 : i32
    %13 = arith.addi %0, %c0_i32 : i32
    %14 = arith.index_cast %13 : i32 to index
    %15 = memref.load %arg3[%14] : memref<8xf32, #tpu.memory_space<smem>>
    %cst = arith.constant 0.000000e+00 : f32
    %16 = arith.subf %cst, %15 : f32
    %17 = arith.sitofp %12 : vector<8x8xi32> to vector<8x8xf32>
    %18 = vector.broadcast %16 : f32 to vector<8x8xf32>
    %19 = arith.mulf %17, %18 : vector<8x8xf32>
    %c0 = arith.constant 0 : index
    %c0_1 = arith.constant 0 : index
    %c0_2 = arith.constant 0 : index
    %c0_3 = arith.constant 0 : index
    %20 = vector.load %arg4[%c0, %c0_1, %c0_2, %c0_3] : memref<1x4x8x8xf32, #tpu.memory_space<vmem>>, vector<1x1x8x8xf32>
    %21 = vector.shape_cast %20 : vector<1x1x8x8xf32> to vector<8x8xf32>
    %22 = vector.shape_cast %19 : vector<8x8xf32> to vector<1x1x8x8xf32>
    tpu.vector_store %arg4[%c0, %c0_1, %c0_2, %c0_3], %22 {strides = array<i32>} : memref<1x4x8x8xf32, #tpu.memory_space<vmem>>, vector<1x1x8x8xf32>,
    %c1_i32 = arith.constant 1 : i32
    %23 = arith.addi %0, %c1_i32 : i32
    %24 = arith.index_cast %23 : i32 to index
    %25 = memref.load %arg3[%24] : memref<8xf32, #tpu.memory_space<smem>>
    %cst_4 = arith.constant 0.000000e+00 : f32
    %26 = arith.subf %cst_4, %25 : f32
    %27 = arith.sitofp %12 : vector<8x8xi32> to vector<8x8xf32>
    %28 = vector.broadcast %26 : f32 to vector<8x8xf32>
    %29 = arith.mulf %27, %28 : vector<8x8xf32>
    %c0_5 = arith.constant 0 : index
    %c1 = arith.constant 1 : index
    %c0_6 = arith.constant 0 : index
    %c0_7 = arith.constant 0 : index
    %30 = vector.load %arg4[%c0_5, %c1, %c0_6, %c0_7] : memref<1x4x8x8xf32, #tpu.memory_space<vmem>>, vector<1x1x8x8xf32>
    %31 = vector.shape_cast %30 : vector<1x1x8x8xf32> to vector<8x8xf32>
    %32 = vector.shape_cast %29 : vector<8x8xf32> to vector<1x1x8x8xf32>
    tpu.vector_store %arg4[%c0_5, %c1, %c0_6, %c0_7], %32 {strides = array<i32>} : memref<1x4x8x8xf32, #tpu.memory_space<vmem>>, vector<1x1x8x8xf32>,
    %c2_i32 = arith.constant 2 : i32
    %33 = arith.addi %0, %c2_i32 : i32
    %34 = arith.index_cast %33 : i32 to index
    %35 = memref.load %arg3[%34] : memref<8xf32, #tpu.memory_space<smem>>
    %cst_8 = arith.constant 0.000000e+00 : f32
    %36 = arith.subf %cst_8, %35 : f32
    %37 = arith.sitofp %12 : vector<8x8xi32> to vector<8x8xf32>
    %38 = vector.broadcast %36 : f32 to vector<8x8xf32>
    %39 = arith.mulf %37, %38 : vector<8x8xf32>
    %c0_9 = arith.constant 0 : index
    %c2 = arith.constant 2 : index
    %c0_10 = arith.constant 0 : index
    %c0_11 = arith.constant 0 : index
    %40 = vector.load %arg4[%c0_9, %c2, %c0_10, %c0_11] : memref<1x4x8x8xf32, #tpu.memory_space<vmem>>, vector<1x1x8x8xf32>
    %41 = vector.shape_cast %40 : vector<1x1x8x8xf32> to vector<8x8xf32>
    %42 = vector.shape_cast %39 : vector<8x8xf32> to vector<1x1x8x8xf32>
    tpu.vector_store %arg4[%c0_9, %c2, %c0_10, %c0_11], %42 {strides = array<i32>} : memref<1x4x8x8xf32, #tpu.memory_space<vmem>>, vector<1x1x8x8xf32>,
    %c3_i32 = arith.constant 3 : i32
    %43 = arith.addi %0, %c3_i32 : i32
    %44 = arith.index_cast %43 : i32 to index
    %45 = memref.load %arg3[%44] : memref<8xf32, #tpu.memory_space<smem>>
    %cst_12 = arith.constant 0.000000e+00 : f32
    %46 = arith.subf %cst_12, %45 : f32
    %47 = arith.sitofp %12 : vector<8x8xi32> to vector<8x8xf32>
    %48 = vector.broadcast %46 : f32 to vector<8x8xf32>
    %49 = arith.mulf %47, %48 : vector<8x8xf32>
    %c0_13 = arith.constant 0 : index
    %c3 = arith.constant 3 : index
    %c0_14 = arith.constant 0 : index
    %c0_15 = arith.constant 0 : index
    %50 = vector.load %arg4[%c0_13, %c3, %c0_14, %c0_15] : memref<1x4x8x8xf32, #tpu.memory_space<vmem>>, vector<1x1x8x8xf32>
    %51 = vector.shape_cast %50 : vector<1x1x8x8xf32> to vector<8x8xf32>
    %52 = vector.shape_cast %49 : vector<8x8xf32> to vector<1x1x8x8xf32>
    tpu.vector_store %arg4[%c0_13, %c3, %c0_14, %c0_15], %52 {strides = array<i32>} : memref<1x4x8x8xf32, #tpu.memory_space<vmem>>, vector<1x1x8x8xf32>,
    return
  }
  func.func @transform_0(%arg0: i32, %arg1: i32, %arg2: i32, %arg3: memref<8xf32, #tpu.memory_space<smem>>) -> (i32, i32, i32, i32) {
    %c0_i32 = arith.constant 0 : i32
    %c0_i32_0 = arith.constant 0 : i32
    return %c0_i32, %arg0, %arg1, %arg2 : i32, i32, i32, i32
  }
}

</mosaic_0001>

<llo_original>
// kernel: tpu_custom_call.1
$region0: #{tpu_custom_call.1}
  #allocation0 [shape = 'u32[]', space=smem, size = 0x4, offset = 0x4, fixed_abs, tag = 'smem constant byte address 0x4 - core index']
  #allocation1 [shape = 'u32[72,128]{1,0:T(1,128)}', space=vmem, size = 0x9000, scoped, tag = 'internal scratch']
  #allocation2 [shape = 's32[1]{0}', space=sflag, size = 0x4, scoped, tag = 'scoped memory for tpu_custom_call.1']
  #allocation3 [shape = 'u8[512]{0}', space=smem, size = 0x200, scoped, tag = 'prefetched SMEM operand 0']
  %s0 = inlined_call_operand.hbm [shape: f32[8], index: 0, kind: input, shape index: {}]
  %s1 = inlined_call_operand.hbm [shape: f32[1,8,8,8], index: 1, kind: output, shape index: {}]
  %s2 = sld [smem:[#allocation0]]
  $region25: #{tpu_custom_call.1} parent=0
    _
  %s4 = ssub.s32 1, %s2
  %s5 = scalar_select 0, %s4, %s2
  %s7 = sshll.u32 %s0, 4
  %s8 = int_to_ptr.hbm [resolvable:$true] %s7
  %10 = dma.hbm_to_smem %s8, 16, [#allocation3], [#allocation2]
  %12 = dma.done [#allocation2], 16
  %13 = sfence
  $region1: #{tpu_custom_call.1} parent=0
    #allocation4 [shape = 'u8[32768]{0}', space=vmem, size = 0x8000, scoped, tag = 'output window, operand 0']
    #allocation5 [shape = 's32[2]{0}', space=sflag, size = 0x8, scoped, tag = 'scoped memory for tpu_custom_call.1']
    %14 = vsyncpa [#allocation5], 0
    %s15 = scalar_lea.sflag [#allocation5], 1
    %16 = vsyncpa %s15, 0
    loop: start=0, step=1, limit=3
    $region2: #{tpu_custom_call.1} parent=1 // loop_pre_header
      _
    $region3: #{tpu_custom_call.1} parent=1 // loop_header
      %s18 = sphi 0, %s22
      %p19 = scmp.ge.s32.totalorder %s18, 3
      %s24 = sphi 0, %s40
      %s25 = sphi 0, %s36
      %s26 = sphi 0, %s32
      %s27 = sphi 0, %s24
      %s28 = sphi 0, %s25
      %s29 = sphi 0, %s26
      %s47 = sphi 0, %s49
      %s50 = sphi 0, %s47
      %s60 = sphi 0, %s50
    $region4: #{tpu_custom_call.1} parent=1 // loop_header_branch
      %21 = sbr.rel (%p19) target = $region8
    $region5: #{tpu_custom_call.1} parent=1 // loop_body
      %s23 = ssub.s32 %s18, 1
      %s30 = sadd.s32 1, %s26
      %p31 = scmp.ge.s32.totalorder %s30, 1
      %s32 = scalar_select %p31, 0, %s30
      %s33 = sadd.s32 1, %s25
      %s34 = scalar_select %p31, %s33, %s25
      %p35 = scmp.ge.s32.totalorder %s34, 1
      %s36 = scalar_select %p35, 0, %s34
      %s37 = sadd.s32 1, %s24
      %s38 = scalar_select %p35, %s37, %s24
      %p39 = scmp.ge.s32.totalorder %s38, 2
      %s40 = scalar_select %p39, 0, %s38
      %s41 = ssub.s32 %s24, %s40
      %s42 = ssub.s32 %s25, %s36
      %s43 = sor.u32 %s41, %s42
      %s44 = ssub.s32 %s26, %s32
      %s45 = sor.u32 %s43, %s44
      %p46 = scmp.eq.s32.totalorder %s45, 0
      %s48 = sadd.s32 %s47, 1
      %s49 = scalar_select %p46, %s47, %s48
      %p51 = pneg %p46
      %p52 = scmp.eq.s32.totalorder %s18, 1
      %p53 = por %p51, %p52
      %p54 = scmp.ne.s32.totalorder %s47, %s50
      %p55 = scmp.eq.s32.totalorder %s18, 0
      %p56 = por %p54, %p55
      %p57 = scmp.ne.s32.totalorder %s47, %s50
      %p58 = scmp.eq.s32.totalorder %s23, 1
      %p59 = por %p57, %p58
      %p61 = scmp.ne.s32.totalorder %s50, %s60
      %p62 = scmp.eq.s32.totalorder %s23, 0
      %p63 = por %p61, %p62
      %p64 = scmp.lt.s32.totalorder %s18, 2
      // Predicated region
      $region9: #{tpu_custom_call.1} parent=5 // pred_check
        %p65 = pneg %p64
      $region10: #{tpu_custom_call.1} parent=5 // pred_check_branch
        %67 = sbr.rel (%p65) target = $region12
      $region11: #{tpu_custom_call.1} parent=5 // pred_region
        %p68 = pneg %p56
        %p69 = pneg %p53
        %s70 = sand.u32 %s47, 1
        %s71 = scalar_lea.sflag [#allocation5], %s70
        %s72 = sand.u32 %s47, 1
        %s73 = smul.addr %s72, 32
        %s74 = scalar_lea.vmem [#allocation4], %s73
        %s75 = smul.u32 4, %s24
        %s76 = smul.u32 %s24, 4
        %s77 = smul.u32 %s25, 8
        %s78 = smul.u32 %s26, 8
        %v79 = vlaneseq
        %v80 = vshrl.u32 %v79, 7
        %v81 = vstv %s77
        %v82 = vadd.s32 %v80, %v81
        %v83 = vlaneseq
        %v84 = vand.u32 %v83, 127
        %v85 = vstv %s78
        %v86 = vadd.s32 %v84, %v85
        %v87 = vsub.s32 %v82, %v86
        %vm88 = vcmp.lt.s32.totalorder %v87, 0
        %v89 = vsub.s32 0, %v87
        %v90 = vsel %vm88, %v89, %v87
        %s91 = sld [smem:[#allocation3 + %s76]]
        %s92 = ssub.f32 0.0, %s91
        %v93 = vcvt.s32.f32 %v90
        %v94 = vstv %s92
        %v95 = vmul.f32 %v93, %v94
        %vm96 = vcmask 64512
        %97 = vst.msk [vmem:[%s74] sm:$0xff] %vm96, %v95
        %s98 = sadd.s32 %s76, 1
        %s99 = sld [smem:[#allocation3 + %s98]]
        %s100 = ssub.f32 0.0, %s99
        %v101 = vstv %s100
        %v102 = vmul.f32 %v93, %v101
        %s103 = scalar_lea.vmem %s74, 8 [#allocation4]
        %104 = vst.msk [vmem:[%s103] sm:$0xff] %vm96, %v102
        %s105 = sadd.s32 %s76, 2
        %s106 = sld [smem:[#allocation3 + %s105]]
        %s107 = ssub.f32 0.0, %s106
        %v108 = vstv %s107
        %v109 = vmul.f32 %v93, %v108
        %s110 = scalar_lea.vmem %s74, 16 [#allocation4]
        %111 = vst.msk [vmem:[%s110] sm:$0xff] %vm96, %v109
        %s112 = sadd.s32 %s76, 3
        %s113 = sld [smem:[#allocation3 + %s112]]
        %s114 = ssub.f32 0.0, %s113
        %v115 = vstv %s114
        %v116 = vmul.f32 %v93, %v115
        %s117 = scalar_lea.vmem %s74, 24 [#allocation4]
        %118 = vst.msk [vmem:[%s117] sm:$0xff] %vm96, %v116
        %s119 = sand.u32 %s47, 1
        %s120 = scalar_lea.sflag [#allocation5], %s119
        %s121 = sand.u32 %s47, 1
        %s122 = smul.addr %s121, 32
        %s123 = scalar_lea.vmem [#allocation4], %s122
        // Predicated region
        $region13: #{tpu_custom_call.1} parent=11 // pred_check
          %p124 = pneg %p53
        $region14: #{tpu_custom_call.1} parent=11 // pred_check_branch
          %126 = sbr.rel (%p124) target = $region16
        $region15: #{tpu_custom_call.1} parent=11 // pred_region
          %s127 = smul.u32 4, %s24
          %129 = vsyncadd %s120, 0
          %s130 = sadd.s32 %s26, %s25
          %s131 = sadd.s32 %s130, %s127
          %s132 = smul.addr %s131, 8
          %s133 = scalar_lea.hbm %s1, %s132
          %s134 = sshll.u32 %s123, 4
          %s135 = int_to_ptr.vmem [resolvable:$true] %s134
          %s136 = sshll.u32 %s133, 4
          %s137 = int_to_ptr.hbm [resolvable:$true] %s136
          %142 = dma.vmem_to_hbm [thread:$0]  %s135, 512, %s137, %s120, 128, 128, 8
        $region16: #{tpu_custom_call.1} parent=11 // pred_fallthru
          _
      $region12: #{tpu_custom_call.1} parent=5 // pred_fallthru
        _
      %p143 = scmp.le.s32.totalorder 1, %s18
      // Predicated region
      $region17: #{tpu_custom_call.1} parent=5 // pred_check
        %p144 = pneg %p143
      $region18: #{tpu_custom_call.1} parent=5 // pred_check_branch
        %146 = sbr.rel (%p144) target = $region20
      $region19: #{tpu_custom_call.1} parent=5 // pred_region
        %s147 = ssub.s32 %s18, 1
        // Predicated region
        $region21: #{tpu_custom_call.1} parent=19 // pred_check
          %p148 = pneg %p59
        $region22: #{tpu_custom_call.1} parent=19 // pred_check_branch
          %150 = sbr.rel (%p148) target = $region24
        $region23: #{tpu_custom_call.1} parent=19 // pred_region
          %s151 = sand.u32 %s50, 1
          %s152 = scalar_lea.sflag [#allocation5], %s151
          %s153 = sand.u32 %s50, 1
          %s154 = smul.addr %s153, 32
          %s155 = scalar_lea.vmem [#allocation4], %s154
          %157 = dma.done %s152, 512
        $region24: #{tpu_custom_call.1} parent=19 // pred_fallthru
          _
      $region20: #{tpu_custom_call.1} parent=5 // pred_fallthru
        _
    $region6: #{tpu_custom_call.1} parent=1 // loop_footer
      %s22 = sadd.s32 1, %s18
    $region7: #{tpu_custom_call.1} parent=1 // loop_footer_branch
      %17 = sbr.rel target = $region3
    $region8: #{tpu_custom_call.1} parent=1 // loop_exit
      _
    %158 = vsyncpa [#allocation5], 1
    %s159 = scalar_lea.sflag [#allocation5], 1
    %160 = vsyncpa %s159, 1

</llo_original>
